<compile_context>
chip_gen: v7x
topology: tpu7x:2x2x1
jax: 0.10.0
libtpu: 0.0.40
codegen_flags: <defaults>
</compile_context>

<pallas_src>
import functools

import jax
import jax.numpy as jnp
from jax.experimental import pallas as pl
from jax.experimental.pallas import tpu as pltpu


# Target number of LHS rows fed to the MXU per grid step.  1024 rows amortize
# the per-step grid overhead and keep even v5e's 4x128^2 MXU fed; per-step
# VMEM stays ~1-2 MiB at H=128, far below every generation's limit.
_MXU_ROWS_TARGET = 1024


def _pointwise_conv_kernel(x_ref, w1_ref, b1_ref, w2_ref, b2_ref, out_ref, *,
                           seq_len):
    """One grid step: bblk batch elements -> time-summed hidden features.

    x_ref : (bblk*T, D)  float32   (pre-flattened; cast to bf16 in-kernel)
    w1_ref: (D, H)       bfloat16
    b1_ref: (1, H)       float32
    w2_ref: (H, H)       bfloat16
    b2_ref: (1, H)       float32
    out_ref: (bblk, H)   float32   -- sum over T of relu(conv2(relu(conv1(x))))
    """
    bblk = out_ref.shape[0]

    # bf16 cast on the VPU (hidden under the MXU); keeps the wrapper free of
    # any extra full-array HBM cast/pad pass.
    x = x_ref[...].astype(jnp.bfloat16)                       # (bblk*T, D)

    # conv1 (pointwise) + ReLU; accumulate in f32, elementwise in f32.
    h1 = jnp.dot(x, w1_ref[...], preferred_element_type=jnp.float32)
    h1 = jnp.maximum(h1 + b1_ref[...], 0.0)                   # (bblk*T, H) f32
    # TODO(synk): drop1/drop2 are identity here (eval-mode semantics).

    # conv2 (pointwise) + ReLU.
    h2 = jnp.dot(h1.astype(jnp.bfloat16), w2_ref[...],
                 preferred_element_type=jnp.float32)
    h2 = jnp.maximum(h2 + b2_ref[...], 0.0)                   # (bblk*T, H) f32

    # Global average pooling: only the per-batch SUM over time happens here
    # (XLU cross-sublane reduce).  The 1/T scale and the (H x E=7) classifier
    # are folded into the wrapper so the kernel output stays lane-dense
    # (H = 128) -> unmasked full-lane stores.
    out_ref[...] = jnp.sum(h2.reshape(bblk, seq_len, -1),
                           axis=1).astype(out_ref.dtype)


def pointwise_conv1d_classifier(features, w1, b1, w2, b2, wf, bf):
    """features: (B, T, D) float32. Returns logits (B, E) float32."""
    B, T, D = features.shape
    H = w1.shape[1]

    # --- batch blocking ---------------------------------------------------
    # bblk batch elements per grid step => bblk*T MXU rows per step.
    bblk = max(1, _MXU_ROWS_TARGET // max(T, 1))
    if bblk < B:
        # Multiple blocks: round up to a multiple of 8 (f32 sublane) so the
        # (bblk*T, D) input block and (bblk, H) output block are aligned.
        bblk = ((bblk + 7) // 8) * 8
    if bblk >= B:
        # Single full-extent block: always legal, no alignment/padding needed.
        bblk = B
    n_blocks = pl.cdiv(B, bblk)
    # A ragged last block (B % bblk != 0) is handled by Pallas's masked edge
    # copies: out-of-range output rows are never written back, and each batch
    # element's pooled sum reads only its own rows, so no padding pass needed.

    # Free contiguous reshape: MXU LHS in natural (rows, D) layout.
    x2d = features.reshape(B * T, D)

    kernel = functools.partial(_pointwise_conv_kernel, seq_len=T)

    # NOTE: W1/W2/b1/b2 are grid-invariant and tiny (~80 KiB at H=128).  If H
    # grows large, mark their BlockSpecs pipeline_mode=pl.Buffered(1) (or load
    # once to scratch) and set vmem_limit_bytes for v7x's 64 MiB VMEM.
    # TODO(synk): an optional v7x-only fp8 (e4m3) path for the H x H matmul
    # could raise MXU throughput further; kept bf16 for portability/accuracy.
    pooled_sum = pl.pallas_call(
        kernel,
        out_shape=jax.ShapeDtypeStruct((B, H), jnp.float32),
        grid_spec=pltpu.PrefetchScalarGridSpec(
            num_scalar_prefetch=0,
            grid=(n_blocks,),
            in_specs=[
                pl.BlockSpec((bblk * T, D), lambda b: (b, 0)),   # features f32
                pl.BlockSpec((D, H), lambda b: (0, 0)),          # W1 bf16
                pl.BlockSpec((1, H), lambda b: (0, 0)),          # b1 f32
                pl.BlockSpec((H, H), lambda b: (0, 0)),          # W2 bf16
                pl.BlockSpec((1, H), lambda b: (0, 0)),          # b2 f32
            ],
            out_specs=pl.BlockSpec((bblk, H), lambda b: (b, 0)),  # sum_t(h2)
        ),
        compiler_params=pltpu.CompilerParams(
            dimension_semantics=("parallel",)),
    )(
        x2d,
        w1.astype(jnp.bfloat16),
        b1.reshape(1, H).astype(jnp.float32),
        w2.astype(jnp.bfloat16),
        b2.reshape(1, H).astype(jnp.float32),
    )

    # mean over T + final Linear, hoisted out of the per-batch grid:
    # (sum_t h2) @ (Wf / T) + bf  ==  mean_t(h2) @ Wf + bf
    return pooled_sum @ (wf.astype(jnp.float32) / T) + bf.astype(jnp.float32)


def _reference(features, w1, b1, w2, b2, wf, bf):
    h1 = jnp.maximum(jnp.einsum("btd,dh->bth", features, w1) + b1, 0.0)
    h2 = jnp.maximum(jnp.einsum("bth,hk->btk", h1, w2) + b2, 0.0)
    pooled = h2.mean(axis=1)
    return pooled @ wf + bf


if __name__ == "__main__":
    # Small shapes consistent with the module's forward contract.
    B, T, D = 8, 8, 32          # batch, seq_len, input_dim
    H, E = 128, 7               # hidden_dim, num_emotions

    key = jax.random.PRNGKey(0)
    k_x, k_w1, k_b1, k_w2, k_b2, k_wf, k_bf = jax.random.split(key, 7)

    features = jax.random.normal(k_x, (B, T, D), dtype=jnp.float32)

    # Deterministic parameter init (uniform, roughly PyTorch-style fan_in scaling).
    def uinit(k, shape, fan_in):
        bound = 1.0 / jnp.sqrt(fan_in)
        return jax.random.uniform(k, shape, jnp.float32, -bound, bound)

    w1 = uinit(k_w1, (D, H), D)     # conv1 weight (input_dim -> hidden_dim)
    b1 = uinit(k_b1, (H,), D)
    w2 = uinit(k_w2, (H, H), H)     # conv2 weight (hidden_dim -> hidden_dim)
    b2 = uinit(k_b2, (H,), H)
    wf = uinit(k_wf, (H, E), H)     # fc weight (hidden_dim -> num_emotions)
    bf = uinit(k_bf, (E,), H)

    logits = pointwise_conv1d_classifier(features, w1, b1, w2, b2, wf, bf)
    jax.block_until_ready(logits)

    ref = _reference(features, w1, b1, w2, b2, wf, bf)
    assert logits.shape == (B, E)
    # Tolerance accounts for bf16 MXU operands (f32 accumulation).
    assert jnp.allclose(logits, ref, atol=2e-2, rtol=2e-2), (
        jnp.max(jnp.abs(logits - ref)))

    print("KERNEL_OK")
</pallas_src>

<mosaic_0001>
module attributes {stable_mosaic.version = 11 : i64} {
  func.func @_pointwise_conv_kernel(%arg0: i32, %arg1: memref<64x32xf32, #tpu.memory_space<vmem>>, %arg2: memref<32x128xbf16, #tpu.memory_space<vmem>>, %arg3: memref<1x128xf32, #tpu.memory_space<vmem>>, %arg4: memref<128x128xbf16, #tpu.memory_space<vmem>>, %arg5: memref<1x128xf32, #tpu.memory_space<vmem>>, %arg6: memref<8x128xf32, #tpu.memory_space<vmem>>) attributes {dimension_semantics = [#tpu.dimension_semantics<parallel>], iteration_bounds = array<i64: 1>, scalar_prefetch = 0 : i64, scratch_operands = 0 : i64, tpu.core_type = #tpu.core_type<tc>, window_params = [{transform_indices = @transform_0, window_bounds = array<i64: 64, 32>}, {pipeline_mode = #tpu.pipeline_mode<synchronous>, transform_indices = @transform_1, window_bounds = array<i64: 32, 128>}, {pipeline_mode = #tpu.pipeline_mode<synchronous>, transform_indices = @transform_2, window_bounds = array<i64: 1, 128>}, {pipeline_mode = #tpu.pipeline_mode<synchronous>, transform_indices = @transform_3, window_bounds = array<i64: 128, 128>}, {pipeline_mode = #tpu.pipeline_mode<synchronous>, transform_indices = @transform_4, window_bounds = array<i64: 1, 128>}, {transform_indices = @transform_5, window_bounds = array<i64: 8, 128>}]} {
    %c0 = arith.constant 0 : index
    %c0_0 = arith.constant 0 : index
    %0 = vector.load %arg1[%c0, %c0_0] : memref<64x32xf32, #tpu.memory_space<vmem>>, vector<64x32xf32>
    %1 = arith.truncf %0 : vector<64x32xf32> to vector<64x32xbf16>
    %c0_1 = arith.constant 0 : index
    %c0_2 = arith.constant 0 : index
    %2 = vector.load %arg2[%c0_1, %c0_2] : memref<32x128xbf16, #tpu.memory_space<vmem>>, vector<32x128xbf16>
    %cst = arith.constant dense<0.000000e+00> : vector<64x128xf32>
    %3 = tpu.matmul %1, %2, %cst {dimension_numbers = #tpu.dot_dimension_numbers<[1], [0], [0], [1], [0, 0, 1, 1], [], []>} : vector<64x32xbf16>, vector<32x128xbf16>, vector<64x128xf32> -> vector<64x128xf32>
    %c0_3 = arith.constant 0 : index
    %c0_4 = arith.constant 0 : index
    %4 = vector.load %arg3[%c0_3, %c0_4] : memref<1x128xf32, #tpu.memory_space<vmem>>, vector<1x128xf32>
    %5 = vector.broadcast %4 : vector<1x128xf32> to vector<64x128xf32>
    %6 = arith.addf %3, %5 : vector<64x128xf32>
    %cst_5 = arith.constant 0.000000e+00 : f32
    %7 = vector.broadcast %cst_5 : f32 to vector<64x128xf32>
    %8 = arith.maximumf %6, %7 : vector<64x128xf32>
    %9 = arith.truncf %8 : vector<64x128xf32> to vector<64x128xbf16>
    %c0_6 = arith.constant 0 : index
    %c0_7 = arith.constant 0 : index
    %10 = vector.load %arg4[%c0_6, %c0_7] : memref<128x128xbf16, #tpu.memory_space<vmem>>, vector<128x128xbf16>
    %cst_8 = arith.constant dense<0.000000e+00> : vector<64x128xf32>
    %11 = tpu.matmul %9, %10, %cst_8 {dimension_numbers = #tpu.dot_dimension_numbers<[1], [0], [0], [1], [0, 0, 1, 1], [], []>} : vector<64x128xbf16>, vector<128x128xbf16>, vector<64x128xf32> -> vector<64x128xf32>
    %c0_9 = arith.constant 0 : index
    %c0_10 = arith.constant 0 : index
    %12 = vector.load %arg5[%c0_9, %c0_10] : memref<1x128xf32, #tpu.memory_space<vmem>>, vector<1x128xf32>
    %13 = vector.broadcast %12 : vector<1x128xf32> to vector<64x128xf32>
    %14 = arith.addf %11, %13 : vector<64x128xf32>
    %cst_11 = arith.constant 0.000000e+00 : f32
    %15 = vector.broadcast %cst_11 : f32 to vector<64x128xf32>
    %16 = arith.maximumf %14, %15 : vector<64x128xf32>
    %17 = vector.shape_cast %16 : vector<64x128xf32> to vector<8x8x128xf32>
    %cst_12 = arith.constant dense<0.000000e+00> : vector<8x128xf32>
    %18 = vector.multi_reduction <add>, %17, %cst_12 [1] : vector<8x8x128xf32> to vector<8x128xf32>
    %c0_13 = arith.constant 0 : index
    %c0_14 = arith.constant 0 : index
    %19 = vector.load %arg6[%c0_13, %c0_14] : memref<8x128xf32, #tpu.memory_space<vmem>>, vector<8x128xf32>
    tpu.vector_store %arg6[%c0_13, %c0_14], %18 {strides = array<i32>} : memref<8x128xf32, #tpu.memory_space<vmem>>, vector<8x128xf32>,
    return
  }
  func.func @transform_0(%arg0: i32) -> (i32, i32) {
    %c0_i32 = arith.constant 0 : i32
    %c0_i32_0 = arith.constant 0 : i32
    return %arg0, %c0_i32 : i32, i32
  }
  func.func @transform_1(%arg0: i32) -> (i32, i32) {
    %c0_i32 = arith.constant 0 : i32
    %c0_i32_0 = arith.constant 0 : i32
    %c0_i32_1 = arith.constant 0 : i32
    return %c0_i32, %c0_i32_0 : i32, i32
  }
  func.func @transform_2(%arg0: i32) -> (i32, i32) {
    %c0_i32 = arith.constant 0 : i32
    %c0_i32_0 = arith.constant 0 : i32
    %c0_i32_1 = arith.constant 0 : i32
    return %c0_i32, %c0_i32_0 : i32, i32
  }
  func.func @transform_3(%arg0: i32) -> (i32, i32) {
    %c0_i32 = arith.constant 0 : i32
    %c0_i32_0 = arith.constant 0 : i32
    %c0_i32_1 = arith.constant 0 : i32
    return %c0_i32, %c0_i32_0 : i32, i32
  }
  func.func @transform_4(%arg0: i32) -> (i32, i32) {
    %c0_i32 = arith.constant 0 : i32
    %c0_i32_0 = arith.constant 0 : i32
    %c0_i32_1 = arith.constant 0 : i32
    return %c0_i32, %c0_i32_0 : i32, i32
  }
  func.func @transform_5(%arg0: i32) -> (i32, i32) {
    %c0_i32 = arith.constant 0 : i32
    %c0_i32_0 = arith.constant 0 : i32
    return %arg0, %c0_i32 : i32, i32
  }
}

</mosaic_0001>

<llo_original>
// kernel: tpu_custom_call.1
$region0: #{tpu_custom_call.1}
  #allocation0 [shape = 'u32[]', space=smem, size = 0x4, offset = 0x4, fixed_abs, tag = 'smem constant byte address 0x4 - core index']
  #allocation1 [shape = 'u32[144,128]{1,0:T(1,128)}', space=vmem, size = 0x12000, scoped, tag = 'internal scratch']
  %s0 = inlined_call_operand.vmem [shape: f32[64,32], index: 0, kind: input, shape index: {}]
  %s1 = inlined_call_operand.vmem [shape: bf16[32,128], index: 1, kind: input, shape index: {}]
  %s2 = inlined_call_operand.vmem [shape: f32[1,128], index: 2, kind: input, shape index: {}]
  %s3 = inlined_call_operand.vmem [shape: bf16[128,128], index: 3, kind: input, shape index: {}]
  %s4 = inlined_call_operand.vmem [shape: f32[1,128], index: 4, kind: input, shape index: {}]
  %s5 = inlined_call_operand.hbm [shape: f32[8,128], index: 5, kind: output, shape index: {}]
  %s6 = sld [smem:[#allocation0]]
  $region30: #{tpu_custom_call.1} parent=0
    _
  %s8 = ssub.s32 1, %s6
  %s9 = scalar_select 0, %s8, %s6
  $region1: #{tpu_custom_call.1} parent=0
    #allocation2 [shape = 'u8[4096]{0}', space=vmem, size = 0x1000, scoped, tag = 'output window, operand 0, single buffered']
    #allocation3 [shape = 's32[1]{0}', space=sflag, size = 0x4, scoped, tag = 'scoped memory for tpu_custom_call.1']
    %10 = vsyncpa [#allocation3], 0
    // Predicated region
    $region2: #{tpu_custom_call.1} parent=1 // pred_check
      _
    $region3: #{tpu_custom_call.1} parent=1 // pred_check_branch
      %12 = sbr.rel (0) target = $region5
    $region4: #{tpu_custom_call.1} parent=1 // pred_region
      _
    $region5: #{tpu_custom_call.1} parent=1 // pred_fallthru
      _
    // Predicated region
    $region6: #{tpu_custom_call.1} parent=1 // pred_check
      _
    $region7: #{tpu_custom_call.1} parent=1 // pred_check_branch
      %14 = sbr.rel (0) target = $region9
    $region8: #{tpu_custom_call.1} parent=1 // pred_region
      _
    $region9: #{tpu_custom_call.1} parent=1 // pred_fallthru
      _
    // Predicated region
    $region10: #{tpu_custom_call.1} parent=1 // pred_check
      _
    $region11: #{tpu_custom_call.1} parent=1 // pred_check_branch
      %16 = sbr.rel (0) target = $region13
    $region12: #{tpu_custom_call.1} parent=1 // pred_region
      _
    $region13: #{tpu_custom_call.1} parent=1 // pred_fallthru
      _
    // Predicated region
    $region14: #{tpu_custom_call.1} parent=1 // pred_check
      _
    $region15: #{tpu_custom_call.1} parent=1 // pred_check_branch
      %18 = sbr.rel (0) target = $region17
    $region16: #{tpu_custom_call.1} parent=1 // pred_region
      _
    $region17: #{tpu_custom_call.1} parent=1 // pred_fallthru
      _
    // Predicated region
    $region18: #{tpu_custom_call.1} parent=1 // pred_check
      _
    $region19: #{tpu_custom_call.1} parent=1 // pred_check_branch
      %20 = sbr.rel (0) target = $region21
    $region20: #{tpu_custom_call.1} parent=1 // pred_region
      _
    $region21: #{tpu_custom_call.1} parent=1 // pred_fallthru
      _
    %v22 = vld [vmem:[%s0] sm:$0xff]
    %v23 = vld [vmem:[%s0 + $0x8] sm:$0xff]
    %v24 = vld [vmem:[%s0 + $0x10] sm:$0xff]
    %v25 = vld [vmem:[%s0 + $0x18] sm:$0xff]
    %v26 = vld [vmem:[%s0 + $0x20] sm:$0xff]
    %v27 = vld [vmem:[%s0 + $0x28] sm:$0xff]
    %v28 = vld [vmem:[%s0 + $0x30] sm:$0xff]
    %v29 = vld [vmem:[%s0 + $0x38] sm:$0xff]
    %v30 = vpack.c.bf16 %v23, %v22
    %v31 = vpack.c.bf16 %v25, %v24
    %v32 = vpack.c.bf16 %v27, %v26
    %v33 = vpack.c.bf16 %v29, %v28
    %v34 = vld [vmem:[%s1] sm:$0xf]
    %v35 = vld [vmem:[%s1 + $0x4] sm:$0xf]
    %v36 = vld [vmem:[%s1 + $0x8] sm:$0xf]
    %v37 = vld [vmem:[%s1 + $0xc] sm:$0xf]
    %v38 = vld [vmem:[%s2] sm:$0x1]
    %v40 = vlaneseq
    %v41 = vshrl.u32 %v40, 7
    %v42 = vsub.s32 0, %v41
    %v43 = vrot.slane %v38, %v42
    %v49 = vunpack.c.l.b16 %v34
    %v50 = vunpack.c.l.b16 %v35
    %v51 = vunpack.c.l.b16 %v36
    %v52 = vunpack.c.l.b16 %v37
    %v53 = vpack.c.b16 %v50, %v49
    %v54 = vpack.c.b16 %v52, %v51
    %vm57 = vcmask 261120
    %v59 = vsel %vm57, %v30, 0
    %v62 = vsel %vm57, %v31, 0
    %v65 = vsel %vm57, %v32, 0
    %v68 = vsel %vm57, %v33, 0
    %70 = vmatprep.subr.bf16.mxu0 0
    %71 = vmatpush1.bf16.msra.mxu0 %v53
    %72 = vmatprep.subr.bf16.mxu0 0
    %73 = vmatpush1.bf16.msra.mxu0 %v54
    %74 = vmatprep.subr.bf16.mxu0 0
    %75 = vmatpush1.bf16.msra.mxu0 0
    %76 = vmatprep.subr.bf16.mxu0 0
    %77 = vmatpush1.bf16.msra.mxu0 0
    %78 = vmatprep.subr.bf16.mxu0 0
    %79 = vmatpush1.bf16.msra.mxu0 0
    %80 = vmatprep.subr.bf16.mxu0 0
    %81 = vmatpush1.bf16.msra.mxu0 0
    %82 = vmatprep.subr.bf16.mxu0 0
    %83 = vmatpush1.bf16.msra.mxu0 0
    %84 = vmatprep.subr.bf16.mxu0 0
    %85 = vmatpush1.bf16.msra.mxu0 0
    %86 = vmatprep.subr.bf16.mxu0 0
    %87 = vmatpush1.bf16.msra.mxu0 0
    %88 = vmatprep.subr.bf16.mxu0 0
    %89 = vmatpush1.bf16.msra.mxu0 0
    %90 = vmatprep.subr.bf16.mxu0 0
    %91 = vmatpush1.bf16.msra.mxu0 0
    %92 = vmatprep.subr.bf16.mxu0 0
    %93 = vmatpush1.bf16.msra.mxu0 0
    %94 = vmatprep.subr.bf16.mxu0 0
    %95 = vmatpush1.bf16.msra.mxu0 0
    %96 = vmatprep.subr.bf16.mxu0 0
    %97 = vmatpush1.bf16.msra.mxu0 0
    %98 = vmatprep.subr.bf16.mxu0 0
    %99 = vmatpush1.bf16.msra.mxu0 0
    %100 = vmatprep.subr.bf16.mxu0 0
    %101 = vmatpush1.bf16.msra.mxu0 0
    %102 = vmatprep.mubr.bf16.mxu0 0
    %103 = vmatmul.mubr.bf16.gmra.mrb[0].mxu0 %v59
    %v104 = vpop.f32.mrb[0].mxu0
    %v105 = vadd.f32 %v43, %v104
    %v106 = vpop.f32.mrb[0].mxu0
    %v107 = vpop.f32.mrb[0].mxu0
    %v108 = vadd.f32 %v43, %v107
    %v109 = vpop.f32.mrb[0].mxu0
    %110 = vmatprep.mubr.bf16.mxu0 0
    %111 = vmatmul.mubr.bf16.gmra.mrb[0].mxu0 %v62
    %v112 = vpop.f32.mrb[0].mxu0
    %v113 = vadd.f32 %v43, %v112
    %v114 = vpop.f32.mrb[0].mxu0
    %v115 = vpop.f32.mrb[0].mxu0
    %v116 = vadd.f32 %v43, %v115
    %v117 = vpop.f32.mrb[0].mxu0
    %118 = vmatprep.mubr.bf16.mxu0 0
    %119 = vmatmul.mubr.bf16.gmra.mrb[0].mxu0 %v65
    %v120 = vpop.f32.mrb[0].mxu0
    %v121 = vadd.f32 %v43, %v120
    %v122 = vpop.f32.mrb[0].mxu0
    %v123 = vpop.f32.mrb[0].mxu0
    %v124 = vadd.f32 %v43, %v123
    %v125 = vpop.f32.mrb[0].mxu0
    %126 = vmatprep.mubr.bf16.mxu0 0
    %127 = vmatmul.mubr.bf16.gmra.mrb[0].mxu0 %v68
    %v128 = vpop.f32.mrb[0].mxu0
    %v129 = vadd.f32 %v43, %v128
    %v130 = vpop.f32.mrb[0].mxu0
    %v131 = vpop.f32.mrb[0].mxu0
    %v132 = vadd.f32 %v43, %v131
    %v133 = vpop.f32.mrb[0].mxu0
    %134 = vdwg.mxu0
    %v135 = vmax.f32 %v105, 0.0
    %v136 = vmax.f32 %v108, 0.0
    %v137 = vmax.f32 %v113, 0.0
    %v138 = vmax.f32 %v116, 0.0
    %v139 = vmax.f32 %v121, 0.0
    %v140 = vmax.f32 %v124, 0.0
    %v141 = vmax.f32 %v129, 0.0
    %v142 = vmax.f32 %v132, 0.0
    %v143 = vpack.c.bf16 %v136, %v135
    %v144 = vpack.c.bf16 %v138, %v137
    %v145 = vpack.c.bf16 %v140, %v139
    %v146 = vpack.c.bf16 %v142, %v141
    %v147 = vld [vmem:[%s3] sm:$0xf]
    %v148 = vld [vmem:[%s3 + $0x4] sm:$0xf]
    %v149 = vld [vmem:[%s3 + $0x8] sm:$0xf]
    %v150 = vld [vmem:[%s3 + $0xc] sm:$0xf]
    %v151 = vld [vmem:[%s3 + $0x10] sm:$0xf]
    %v152 = vld [vmem:[%s3 + $0x14] sm:$0xf]
    %v153 = vld [vmem:[%s3 + $0x18] sm:$0xf]
    %v154 = vld [vmem:[%s3 + $0x1c] sm:$0xf]
    %v155 = vld [vmem:[%s3 + $0x20] sm:$0xf]
    %v156 = vld [vmem:[%s3 + $0x24] sm:$0xf]
    %v157 = vld [vmem:[%s3 + $0x28] sm:$0xf]
    %v158 = vld [vmem:[%s3 + $0x2c] sm:$0xf]
    %v159 = vld [vmem:[%s3 + $0x30] sm:$0xf]
    %v160 = vld [vmem:[%s3 + $0x34] sm:$0xf]
    %v161 = vld [vmem:[%s3 + $0x38] sm:$0xf]
    %v162 = vld [vmem:[%s3 + $0x3c] sm:$0xf]
    %v163 = vld [vmem:[%s4] sm:$0x1]
    %v165 = vlaneseq
    %v166 = vshrl.u32 %v165, 7
    %v167 = vsub.s32 0, %v166
    %v168 = vrot.slane %v163, %v167
    %v186 = vunpack.c.l.b16 %v147
    %v187 = vunpack.c.l.b16 %v148
    %v188 = vunpack.c.l.b16 %v149
    %v189 = vunpack.c.l.b16 %v150
    %v190 = vunpack.c.l.b16 %v151
    %v191 = vunpack.c.l.b16 %v152
    %v192 = vunpack.c.l.b16 %v153
    %v193 = vunpack.c.l.b16 %v154
    %v194 = vunpack.c.l.b16 %v155
    %v195 = vunpack.c.l.b16 %v156
    %v196 = vunpack.c.l.b16 %v157
    %v197 = vunpack.c.l.b16 %v158
    %v198 = vunpack.c.l.b16 %v159
    %v199 = vunpack.c.l.b16 %v160
    %v200 = vunpack.c.l.b16 %v161
    %v201 = vunpack.c.l.b16 %v162
    %v202 = vpack.c.b16 %v187, %v186
    %v203 = vpack.c.b16 %v189, %v188
    %v204 = vpack.c.b16 %v191, %v190
    %v205 = vpack.c.b16 %v193, %v192
    %v206 = vpack.c.b16 %v195, %v194
    %v207 = vpack.c.b16 %v197, %v196
    %v208 = vpack.c.b16 %v199, %v198
    %v209 = vpack.c.b16 %v201, %v200
    %218 = vmatprep.subr.bf16.mxu0 0
    %219 = vmatpush1.bf16.msra.mxu0 %v202
    %220 = vmatprep.subr.bf16.mxu0 0
    %221 = vmatpush1.bf16.msra.mxu0 %v203
    %222 = vmatprep.subr.bf16.mxu0 0
    %223 = vmatpush1.bf16.msra.mxu0 %v204
    %224 = vmatprep.subr.bf16.mxu0 0
    %225 = vmatpush1.bf16.msra.mxu0 %v205
    %226 = vmatprep.subr.bf16.mxu0 0
    %227 = vmatpush1.bf16.msra.mxu0 %v206
    %228 = vmatprep.subr.bf16.mxu0 0
    %229 = vmatpush1.bf16.msra.mxu0 %v207
    %230 = vmatprep.subr.bf16.mxu0 0
    %231 = vmatpush1.bf16.msra.mxu0 %v208
    %232 = vmatprep.subr.bf16.mxu0 0
    %233 = vmatpush1.bf16.msra.mxu0 %v209
    %234 = vmatprep.subr.bf16.mxu0 0
    %235 = vmatpush1.bf16.msra.mxu0 0
    %236 = vmatprep.subr.bf16.mxu0 0
    %237 = vmatpush1.bf16.msra.mxu0 0
    %238 = vmatprep.subr.bf16.mxu0 0
    %239 = vmatpush1.bf16.msra.mxu0 0
    %240 = vmatprep.subr.bf16.mxu0 0
    %241 = vmatpush1.bf16.msra.mxu0 0
    %242 = vmatprep.subr.bf16.mxu0 0
    %243 = vmatpush1.bf16.msra.mxu0 0
    %244 = vmatprep.subr.bf16.mxu0 0
    %245 = vmatpush1.bf16.msra.mxu0 0
    %246 = vmatprep.subr.bf16.mxu0 0
    %247 = vmatpush1.bf16.msra.mxu0 0
    %248 = vmatprep.subr.bf16.mxu0 0
    %249 = vmatpush1.bf16.msra.mxu0 0
    %250 = vmatprep.mubr.bf16.mxu0 0
    %251 = vmatmul.mubr.bf16.gmra.mrb[0].mxu0 %v143
    %v252 = vpop.f32.mrb[0].mxu0
    %v253 = vadd.f32 %v168, %v252
    %v254 = vpop.f32.mrb[0].mxu0
    %v255 = vpop.f32.mrb[0].mxu0
    %v256 = vadd.f32 %v168, %v255
    %v257 = vpop.f32.mrb[0].mxu0
    %258 = vmatprep.mubr.bf16.mxu0 0
    %259 = vmatmul.mubr.bf16.gmra.mrb[0].mxu0 %v144
    %v260 = vpop.f32.mrb[0].mxu0
    %v261 = vadd.f32 %v168, %v260
    %v262 = vpop.f32.mrb[0].mxu0
    %v263 = vpop.f32.mrb[0].mxu0
    %v264 = vadd.f32 %v168, %v263
    %v265 = vpop.f32.mrb[0].mxu0
    %266 = vmatprep.mubr.bf16.mxu0 0
    %267 = vmatmul.mubr.bf16.gmra.mrb[0].mxu0 %v145
    %v268 = vpop.f32.mrb[0].mxu0
    %v269 = vadd.f32 %v168, %v268
    %v270 = vpop.f32.mrb[0].mxu0
    %v271 = vpop.f32.mrb[0].mxu0
    %v272 = vadd.f32 %v168, %v271
    %v273 = vpop.f32.mrb[0].mxu0
    %274 = vmatprep.mubr.bf16.mxu0 0
    %275 = vmatmul.mubr.bf16.gmra.mrb[0].mxu0 %v146
    %v276 = vpop.f32.mrb[0].mxu0
    %v277 = vadd.f32 %v168, %v276
    %v278 = vpop.f32.mrb[0].mxu0
    %v279 = vpop.f32.mrb[0].mxu0
    %v280 = vadd.f32 %v168, %v279
    %v281 = vpop.f32.mrb[0].mxu0
    %282 = vdwg.mxu0
    %v283 = vmax.f32 %v253, 0.0
    %v284 = vmax.f32 %v256, 0.0
    %v285 = vmax.f32 %v261, 0.0
    %v286 = vmax.f32 %v264, 0.0
    %v287 = vmax.f32 %v269, 0.0
    %v288 = vmax.f32 %v272, 0.0
    %v289 = vmax.f32 %v277, 0.0
    %v290 = vmax.f32 %v280, 0.0
    %v291 = vrot.slane %v283, 4
    %v292 = vadd.f32 %v283, %v291
    %v293 = vrot.slane %v292, 2
    %v294 = vadd.f32 %v292, %v293
    %v295 = vrot.slane %v294, 1
    %v296 = vadd.f32 %v294, %v295
    %v297 = vrot.slane %v284, 4
    %v298 = vadd.f32 %v284, %v297
    %v299 = vrot.slane %v298, 2
    %v300 = vadd.f32 %v298, %v299
    %v301 = vrot.slane %v300, 1
    %v302 = vadd.f32 %v300, %v301
    %v303 = vrot.slane %v285, 4
    %v304 = vadd.f32 %v285, %v303
    %v305 = vrot.slane %v304, 2
    %v306 = vadd.f32 %v304, %v305
    %v307 = vrot.slane %v306, 1
    %v308 = vadd.f32 %v306, %v307
    %v309 = vrot.slane %v286, 4
    %v310 = vadd.f32 %v286, %v309
    %v311 = vrot.slane %v310, 2
    %v312 = vadd.f32 %v310, %v311
    %v313 = vrot.slane %v312, 1
    %v314 = vadd.f32 %v312, %v313
    %v315 = vrot.slane %v287, 4
    %v316 = vadd.f32 %v287, %v315
    %v317 = vrot.slane %v316, 2
    %v318 = vadd.f32 %v316, %v317
    %v319 = vrot.slane %v318, 1
    %v320 = vadd.f32 %v318, %v319
    %v321 = vrot.slane %v288, 4
    %v322 = vadd.f32 %v288, %v321
    %v323 = vrot.slane %v322, 2
    %v324 = vadd.f32 %v322, %v323
    %v325 = vrot.slane %v324, 1
    %v326 = vadd.f32 %v324, %v325
    %v327 = vrot.slane %v289, 4
    %v328 = vadd.f32 %v289, %v327
    %v329 = vrot.slane %v328, 2
    %v330 = vadd.f32 %v328, %v329
    %v331 = vrot.slane %v330, 1
    %v332 = vadd.f32 %v330, %v331
    %v333 = vrot.slane %v290, 4
    %v334 = vadd.f32 %v290, %v333
    %v335 = vrot.slane %v334, 2
    %v336 = vadd.f32 %v334, %v335
    %v337 = vrot.slane %v336, 1
    %v338 = vadd.f32 %v336, %v337
    %vm347 = vcmask 1041409
    %v348 = vsel %vm347, %v302, %v296
    %vm349 = vcmask 1042434
    %v350 = vsel %vm349, %v308, %v348
    %vm351 = vcmask 1043459
    %v352 = vsel %vm351, %v314, %v350
    %vm353 = vcmask 1044484
    %v354 = vsel %vm353, %v320, %v352
    %vm355 = vcmask 1045509
    %v356 = vsel %vm355, %v326, %v354
    %vm357 = vcmask 1046534
    %v358 = vsel %vm357, %v332, %v356
    %vm359 = vcmask 1047559
    %v360 = vsel %vm359, %v338, %v358
    %362 = vst [vmem:[#allocation2] sm:$0xff] %v360
    // Predicated region
    $region22: #{tpu_custom_call.1} parent=1 // pred_check
      _
    $region23: #{tpu_custom_call.1} parent=1 // pred_check_branch
      %364 = sbr.rel (0) target = $region25
    $region24: #{tpu_custom_call.1} parent=1 // pred_region
      %s366 = ssub.s32 128, 128
      %367 = vsyncadd [#allocation3], %s366
      %s369 = sshll.u32 [#allocation2], 4
      %s370 = int_to_ptr.vmem [resolvable:$true] %s369
      %372 = dma.vmem_to_hbm [thread:$0]  %s370, 128, %s5, [#allocation3]
    $region25: #{tpu_custom_call.1} parent=1 // pred_fallthru
      _
    // Predicated region
    $region26: #{tpu_custom_call.1} parent=1 // pred_check
      _
    $region27: #{tpu_custom_call.1} parent=1 // pred_check_branch
      %374 = sbr.rel (0) target = $region29
    $region28: #{tpu_custom_call.1} parent=1 // pred_region
      %375 = dma.done [#allocation3], 128
    $region29: #{tpu_custom_call.1} parent=1 // pred_fallthru
      _
    %376 = vsyncpa [#allocation3], 1

</llo_original>
